<compile_context>
chip_gen: v6e
topology: v6e:2x2x1
jax: 0.10.0
libtpu: 0.0.40
codegen_flags: <defaults>
</compile_context>

<pallas_src>
import functools

import jax
import jax.numpy as jnp
import numpy as np
from jax.experimental import pallas as pl
from jax.experimental.pallas import tpu as pltpu


def _ae_tile_kernel(x_ref, we_ref, be_ref, wdd_ref, bdd_ref, wdk_ref, bdk_ref,
                    rec_ref, part_ref, *, w_total, tile_w):
    """One (b, w-tile) cell of the autoencoder forward.

    x_ref    [1, D, TW]   raw NCHW slab: rows k = c*H + h (memory order), cols = w
    we_ref   [D, L]       encoder weight, rows in k-order (VMEM-resident)
    be_ref   [1, L]       encoder bias
    wdd_ref  [L, D]       decoder weight, columns in module (d = h*C + c) order
    bdd_ref  [1, D]       decoder bias, d-order
    wdk_ref  [L, D]       decoder weight, columns in k-order (loss diff only)
    bdk_ref  [1, D]       decoder bias, k-order
    rec_ref  [1, TW, D]   reconstruction tile (module feature order)
    part_ref [1, 1, 1, 128]  per-tile partial sum of squared error (scalar, broadcast)
    """
    # Fold the NCHW permute here: one in-VMEM 2-D transpose instead of an HBM pass.
    x_k = x_ref[0]                      # (D, TW), feature-major
    x_rows = x_k.T                      # (TW, D), rows = w, cols in k-order

    enc = jnp.dot(x_rows, we_ref[...], preferred_element_type=jnp.float32) + be_ref[...]

    # Reconstruction in the module's feature order -> written to HBM.
    rec = jnp.dot(enc, wdd_ref[...], preferred_element_type=jnp.float32) + bdd_ref[...]
    rec_ref[0] = rec.astype(rec_ref.dtype)

    # Same reconstruction with k-ordered columns so the diff lines up with x_rows.
    # (Column permutation of `rec`; extra matmul is free in the HBM-bound regime.)
    rec_k = jnp.dot(enc, wdk_ref[...], preferred_element_type=jnp.float32) + bdk_ref[...]

    # Mask w-rows of a partial final block (OOB reads are unspecified, never zero).
    w0 = pl.program_id(1) * tile_w
    w_ids = w0 + jax.lax.broadcasted_iota(jnp.int32, (tile_w, 1), 0)
    valid = w_ids < w_total

    diff = rec_k - x_rows
    sq = jnp.where(valid, diff * diff, 0.0)
    part_ref[...] = jnp.full((1, 1, 1, 128), jnp.sum(sq), dtype=jnp.float32)


def prepare_params(torch_params, *, channels, height):
    """One-time conversion from PyTorch Linear layout (weight [out,in], bias [out]) to
    kernel layout, including the (h*C + c) <-> (c*H + h) feature-order permutation that
    lets the kernel consume the raw NCHW slab directly.  Do NOT call per-forward."""
    enc_w = jnp.asarray(torch_params["enc_w"])   # [L, D]
    enc_b = jnp.asarray(torch_params["enc_b"])   # [L]
    dec_w = jnp.asarray(torch_params["dec_w"])   # [D, L]
    dec_b = jnp.asarray(torch_params["dec_b"])   # [D]
    latent, input_size = enc_w.shape
    assert input_size == channels * height, "input_size must equal H*C"

    # d = h*C + c (module order after permute+flatten); k = c*H + h (NCHW memory order).
    h = np.arange(height)
    c = np.arange(channels)
    d_of_k = jnp.asarray((h[None, :] * channels + c[:, None]).reshape(-1), jnp.int32)

    wd_d = dec_w.T                               # [L, D], columns in d-order
    return {
        "we_k": enc_w.T[d_of_k, :],              # [D, L], rows in k-order
        "be": enc_b.reshape(1, latent),          # [1, L]
        "wd_d": wd_d,                            # [L, D]
        "bd_d": dec_b.reshape(1, input_size),    # [1, D]
        "wd_k": wd_d[:, d_of_k],                 # [L, D], columns in k-order
        "bd_k": dec_b[d_of_k].reshape(1, input_size),
    }


def simple_autoencoder_forward(x, params, *, target_tile_bytes=2 << 20):
    """x: [B, C, H, W] float32.  params: output of prepare_params().

    target_tile_bytes sizes one (TILE_W, D) f32 tile; ~2 MiB is v7x-safe (64 MiB VMEM),
    4-8 MiB is fine on v5e/v6e (128 MiB VMEM)."""
    B, C, H, W = x.shape
    D = H * C                                    # input_size
    we_k, be = params["we_k"], params["be"]
    wd_d, bd_d = params["wd_d"], params["bd_d"]
    wd_k, bd_k = params["wd_k"], params["bd_k"]
    L = we_k.shape[1]
    assert we_k.shape == (D, L) and wd_d.shape == (L, D) and wd_k.shape == (L, D)
    assert be.shape == (1, L) and bd_d.shape == (1, D) and bd_k.shape == (1, D)

    # Free view (no data movement): merge (C, H) -> C*H.  The permute itself happens
    # in-kernel, so x is read from HBM exactly once.
    x2d = x.reshape(B, D, W)

    # Adaptive w-tile: byte-targeted, lane-aligned (multiple of 128) when tiling,
    # otherwise the full W (block dims equal to the full dim are always legal).
    tw_cap = max(128, (target_tile_bytes // (4 * D)) // 128 * 128)
    tw = W if W <= tw_cap else tw_cap
    n_w = pl.cdiv(W, tw)

    # VMEM budget from actual buffers: double-buffered x + rec tiles, live
    # intermediates (xT/enc/rec/rec_k/diff), resident weights (x2 buffers), slack.
    tile_bytes = tw * D * 4
    weight_bytes = (3 * D * L + L + 2 * D) * 4
    vmem_est = 4 * tile_bytes + 6 * tile_bytes + 2 * weight_bytes + (2 << 20)
    vmem_limit = int(min(max(vmem_est, 24 << 20), 40 << 20))   # v7x-safe cap

    M = B * W
    flops = 6 * M * D * L + 6 * M * D
    bytes_accessed = (2 * M * D + 3 * D * L + L + 2 * D + B * n_w * 128) * 4

    rec, partials = pl.pallas_call(
        functools.partial(_ae_tile_kernel, w_total=W, tile_w=tw),
        grid=(B, n_w),
        in_specs=[
            pl.BlockSpec((1, D, tw), lambda b, w: (b, 0, w)),    # raw NCHW slab (streamed)
            pl.BlockSpec((D, L), lambda b, w: (0, 0)),           # enc weight (k-rows), resident
            pl.BlockSpec((1, L), lambda b, w: (0, 0)),           # enc bias
            pl.BlockSpec((L, D), lambda b, w: (0, 0)),           # dec weight (d-cols), resident
            pl.BlockSpec((1, D), lambda b, w: (0, 0)),           # dec bias (d)
            pl.BlockSpec((L, D), lambda b, w: (0, 0)),           # dec weight (k-cols), resident
            pl.BlockSpec((1, D), lambda b, w: (0, 0)),           # dec bias (k)
        ],
        out_specs=(
            pl.BlockSpec((1, tw, D), lambda b, w: (b, w, 0)),        # reconstruction tiles
            pl.BlockSpec((1, 1, 1, 128), lambda b, w: (b, w, 0, 0)),  # per-tile loss partials
        ),
        out_shape=(
            jax.ShapeDtypeStruct((B, W, D), x.dtype),
            jax.ShapeDtypeStruct((B, n_w, 1, 128), jnp.float32),
        ),
        compiler_params=pltpu.CompilerParams(
            dimension_semantics=("parallel", "parallel"),
            vmem_limit_bytes=vmem_limit,
        ),
        cost_estimate=pl.CostEstimate(
            flops=flops, transcendentals=0, bytes_accessed=bytes_accessed),
    )(x2d, we_k, be, wd_d, bd_d, wd_k, bd_k)

    loss = jnp.sum(partials[:, :, 0, 0]) / jnp.float32(M * D)
    return {"full": loss}, rec


def _reference_forward(x, torch_params):
    B, C, H, W = x.shape
    x_flat = jnp.transpose(x, (0, 3, 2, 1)).reshape(B, W, H * C)
    enc = x_flat @ torch_params["enc_w"].T + torch_params["enc_b"]
    rec = enc @ torch_params["dec_w"].T + torch_params["dec_b"]
    loss = jnp.mean((rec - x_flat) ** 2)
    return loss, rec


if __name__ == "__main__":
    # Shapes consistent with the module:
    #   x: [B=2, C=4, H=16, W=16]  ->  seq_len = 16, input_size = H*C = 64, latent = 32
    B, C, H, W = 2, 4, 16, 16
    input_size = H * C
    latent_size = 32

    key = jax.random.PRNGKey(0)
    kx, k1, k2, k3, k4 = jax.random.split(key, 5)

    x = jax.random.normal(kx, (B, C, H, W), dtype=jnp.float32)

    # PyTorch-layout parameters (weight [out, in], bias [out]).
    torch_params = {
        "enc_w": 0.1 * jax.random.normal(k1, (latent_size, input_size), jnp.float32),
        "enc_b": 0.1 * jax.random.normal(k2, (latent_size,), jnp.float32),
        "dec_w": 0.1 * jax.random.normal(k3, (input_size, latent_size), jnp.float32),
        "dec_b": 0.1 * jax.random.normal(k4, (input_size,), jnp.float32),
    }

    params = prepare_params(torch_params, channels=C, height=H)  # one-time re-layout

    fwd = jax.jit(simple_autoencoder_forward)
    loss, rec = fwd(x, params)
    jax.block_until_ready(rec)
    jax.block_until_ready(loss["full"])

    ref_loss, ref_rec = _reference_forward(x, torch_params)
    np.testing.assert_allclose(np.asarray(rec), np.asarray(ref_rec), rtol=1e-5, atol=1e-5)
    np.testing.assert_allclose(float(loss["full"]), float(ref_loss), rtol=1e-5, atol=2e-5)

    print("KERNEL_OK")
</pallas_src>

<mosaic_0001>
module attributes {stable_mosaic.version = 11 : i64} {
  func.func @_ae_tile_kernel(%arg0: i32, %arg1: i32, %arg2: memref<1x64x16xf32, #tpu.memory_space<vmem>>, %arg3: memref<64x32xf32, #tpu.memory_space<vmem>>, %arg4: memref<1x32xf32, #tpu.memory_space<vmem>>, %arg5: memref<32x64xf32, #tpu.memory_space<vmem>>, %arg6: memref<1x64xf32, #tpu.memory_space<vmem>>, %arg7: memref<32x64xf32, #tpu.memory_space<vmem>>, %arg8: memref<1x64xf32, #tpu.memory_space<vmem>>, %arg9: memref<1x16x64xf32, #tpu.memory_space<vmem>>, %arg10: memref<1x1x1x128xf32, #tpu.memory_space<vmem>>) attributes {dimension_semantics = [#tpu.dimension_semantics<parallel>, #tpu.dimension_semantics<parallel>], iteration_bounds = array<i64: 2, 1>, scalar_prefetch = 0 : i64, scratch_operands = 0 : i64, tpu.core_type = #tpu.core_type<tc>, window_params = [{transform_indices = @transform_0, window_bounds = array<i64: 1, 64, 16>}, {pipeline_mode = #tpu.pipeline_mode<synchronous>, transform_indices = @transform_1, window_bounds = array<i64: 64, 32>}, {pipeline_mode = #tpu.pipeline_mode<synchronous>, transform_indices = @transform_2, window_bounds = array<i64: 1, 32>}, {pipeline_mode = #tpu.pipeline_mode<synchronous>, transform_indices = @transform_3, window_bounds = array<i64: 32, 64>}, {pipeline_mode = #tpu.pipeline_mode<synchronous>, transform_indices = @transform_4, window_bounds = array<i64: 1, 64>}, {pipeline_mode = #tpu.pipeline_mode<synchronous>, transform_indices = @transform_5, window_bounds = array<i64: 32, 64>}, {pipeline_mode = #tpu.pipeline_mode<synchronous>, transform_indices = @transform_6, window_bounds = array<i64: 1, 64>}, {transform_indices = @transform_7, window_bounds = array<i64: 1, 16, 64>}, {transform_indices = @transform_8, window_bounds = array<i64: 1, 1, 1, 128>}]} {
    %c0 = arith.constant 0 : index
    %c0_0 = arith.constant 0 : index
    %c0_1 = arith.constant 0 : index
    %0 = vector.load %arg2[%c0, %c0_0, %c0_1] : memref<1x64x16xf32, #tpu.memory_space<vmem>>, vector<1x64x16xf32>
    %1 = vector.shape_cast %0 : vector<1x64x16xf32> to vector<64x16xf32>
    %2 = tpu.transpose %1, [1, 0] : vector<64x16xf32> -> vector<16x64xf32>
    %c0_2 = arith.constant 0 : index
    %c0_3 = arith.constant 0 : index
    %3 = vector.load %arg3[%c0_2, %c0_3] : memref<64x32xf32, #tpu.memory_space<vmem>>, vector<64x32xf32>
    %cst = arith.constant dense<0.000000e+00> : vector<16x32xf32>
    %4 = tpu.matmul %2, %3, %cst {dimension_numbers = #tpu.dot_dimension_numbers<[1], [0], [0], [1], [0, 0, 1, 1], [], []>} : vector<16x64xf32>, vector<64x32xf32>, vector<16x32xf32> -> vector<16x32xf32>
    %c0_4 = arith.constant 0 : index
    %c0_5 = arith.constant 0 : index
    %5 = vector.load %arg4[%c0_4, %c0_5] : memref<1x32xf32, #tpu.memory_space<vmem>>, vector<1x32xf32>
    %6 = vector.broadcast %5 : vector<1x32xf32> to vector<16x32xf32>
    %7 = arith.addf %4, %6 : vector<16x32xf32>
    %c0_6 = arith.constant 0 : index
    %c0_7 = arith.constant 0 : index
    %8 = vector.load %arg5[%c0_6, %c0_7] : memref<32x64xf32, #tpu.memory_space<vmem>>, vector<32x64xf32>
    %cst_8 = arith.constant dense<0.000000e+00> : vector<16x64xf32>
    %9 = tpu.matmul %7, %8, %cst_8 {dimension_numbers = #tpu.dot_dimension_numbers<[1], [0], [0], [1], [0, 0, 1, 1], [], []>} : vector<16x32xf32>, vector<32x64xf32>, vector<16x64xf32> -> vector<16x64xf32>
    %c0_9 = arith.constant 0 : index
    %c0_10 = arith.constant 0 : index
    %10 = vector.load %arg6[%c0_9, %c0_10] : memref<1x64xf32, #tpu.memory_space<vmem>>, vector<1x64xf32>
    %11 = vector.broadcast %10 : vector<1x64xf32> to vector<16x64xf32>
    %12 = arith.addf %9, %11 : vector<16x64xf32>
    %c0_11 = arith.constant 0 : index
    %c0_12 = arith.constant 0 : index
    %c0_13 = arith.constant 0 : index
    %13 = vector.load %arg9[%c0_11, %c0_12, %c0_13] : memref<1x16x64xf32, #tpu.memory_space<vmem>>, vector<1x16x64xf32>
    %14 = vector.shape_cast %13 : vector<1x16x64xf32> to vector<16x64xf32>
    %15 = vector.shape_cast %12 : vector<16x64xf32> to vector<1x16x64xf32>
    tpu.vector_store %arg9[%c0_11, %c0_12, %c0_13], %15 {strides = array<i32>} : memref<1x16x64xf32, #tpu.memory_space<vmem>>, vector<1x16x64xf32>,
    %c0_14 = arith.constant 0 : index
    %c0_15 = arith.constant 0 : index
    %16 = vector.load %arg7[%c0_14, %c0_15] : memref<32x64xf32, #tpu.memory_space<vmem>>, vector<32x64xf32>
    %cst_16 = arith.constant dense<0.000000e+00> : vector<16x64xf32>
    %17 = tpu.matmul %7, %16, %cst_16 {dimension_numbers = #tpu.dot_dimension_numbers<[1], [0], [0], [1], [0, 0, 1, 1], [], []>} : vector<16x32xf32>, vector<32x64xf32>, vector<16x64xf32> -> vector<16x64xf32>
    %c0_17 = arith.constant 0 : index
    %c0_18 = arith.constant 0 : index
    %18 = vector.load %arg8[%c0_17, %c0_18] : memref<1x64xf32, #tpu.memory_space<vmem>>, vector<1x64xf32>
    %19 = vector.broadcast %18 : vector<1x64xf32> to vector<16x64xf32>
    %20 = arith.addf %17, %19 : vector<16x64xf32>
    %c16_i32 = arith.constant 16 : i32
    %21 = arith.muli %arg1, %c16_i32 : i32
    %22 = tpu.iota {dimensions = array<i32: 0>} : vector<16x1xi32>
    %23 = vector.broadcast %21 : i32 to vector<16x1xi32>
    %24 = arith.addi %23, %22 : vector<16x1xi32>
    %c16_i32_19 = arith.constant 16 : i32
    %25 = vector.broadcast %c16_i32_19 : i32 to vector<16x1xi32>
    %26 = arith.cmpi slt, %24, %25 : vector<16x1xi32>
    %27 = arith.subf %20, %2 : vector<16x64xf32>
    %28 = arith.mulf %27, %27 : vector<16x64xf32>
    %cst_20 = arith.constant 0.000000e+00 : f32
    %29 = vector.shape_cast %26 : vector<16x1xi1> to vector<16x1xi1>
    %30 = vector.broadcast %29 : vector<16x1xi1> to vector<16x64xi1>
    %31 = vector.broadcast %cst_20 : f32 to vector<16x64xf32>
    %32 = arith.select %30, %28, %31 : vector<16x64xi1>, vector<16x64xf32>
    %33 = vector.shape_cast %32 : vector<16x64xf32> to vector<1x16x64xf32>
    %cst_21 = arith.constant dense<0.000000e+00> : vector<1xf32>
    %34 = vector.multi_reduction <add>, %33, %cst_21 [1, 2] : vector<1x16x64xf32> to vector<1xf32>
    %35 = vector.shape_cast %34 : vector<1xf32> to vector<1x1x1xf32>
    %36 = vector.extract %35[0, 0, 0] : f32 from vector<1x1x1xf32>
    %37 = vector.broadcast %36 : f32 to vector<1x1x1x128xf32>
    %c0_22 = arith.constant 0 : index
    %c0_23 = arith.constant 0 : index
    %c0_24 = arith.constant 0 : index
    %c0_25 = arith.constant 0 : index
    %38 = vector.load %arg10[%c0_22, %c0_23, %c0_24, %c0_25] : memref<1x1x1x128xf32, #tpu.memory_space<vmem>>, vector<1x1x1x128xf32>
    tpu.vector_store %arg10[%c0_22, %c0_23, %c0_24, %c0_25], %37 {strides = array<i32>} : memref<1x1x1x128xf32, #tpu.memory_space<vmem>>, vector<1x1x1x128xf32>,
    return
  }
  func.func @transform_0(%arg0: i32, %arg1: i32) -> (i32, i32, i32) {
    %c0_i32 = arith.constant 0 : i32
    %c0_i32_0 = arith.constant 0 : i32
    return %arg0, %c0_i32, %arg1 : i32, i32, i32
  }
  func.func @transform_1(%arg0: i32, %arg1: i32) -> (i32, i32) {
    %c0_i32 = arith.constant 0 : i32
    %c0_i32_0 = arith.constant 0 : i32
    %c0_i32_1 = arith.constant 0 : i32
    return %c0_i32, %c0_i32_0 : i32, i32
  }
  func.func @transform_2(%arg0: i32, %arg1: i32) -> (i32, i32) {
    %c0_i32 = arith.constant 0 : i32
    %c0_i32_0 = arith.constant 0 : i32
    %c0_i32_1 = arith.constant 0 : i32
    return %c0_i32, %c0_i32_0 : i32, i32
  }
  func.func @transform_3(%arg0: i32, %arg1: i32) -> (i32, i32) {
    %c0_i32 = arith.constant 0 : i32
    %c0_i32_0 = arith.constant 0 : i32
    %c0_i32_1 = arith.constant 0 : i32
    return %c0_i32, %c0_i32_0 : i32, i32
  }
  func.func @transform_4(%arg0: i32, %arg1: i32) -> (i32, i32) {
    %c0_i32 = arith.constant 0 : i32
    %c0_i32_0 = arith.constant 0 : i32
    %c0_i32_1 = arith.constant 0 : i32
    return %c0_i32, %c0_i32_0 : i32, i32
  }
  func.func @transform_5(%arg0: i32, %arg1: i32) -> (i32, i32) {
    %c0_i32 = arith.constant 0 : i32
    %c0_i32_0 = arith.constant 0 : i32
    %c0_i32_1 = arith.constant 0 : i32
    return %c0_i32, %c0_i32_0 : i32, i32
  }
  func.func @transform_6(%arg0: i32, %arg1: i32) -> (i32, i32) {
    %c0_i32 = arith.constant 0 : i32
    %c0_i32_0 = arith.constant 0 : i32
    %c0_i32_1 = arith.constant 0 : i32
    return %c0_i32, %c0_i32_0 : i32, i32
  }
  func.func @transform_7(%arg0: i32, %arg1: i32) -> (i32, i32, i32) {
    %c0_i32 = arith.constant 0 : i32
    %c0_i32_0 = arith.constant 0 : i32
    return %arg0, %arg1, %c0_i32 : i32, i32, i32
  }
  func.func @transform_8(%arg0: i32, %arg1: i32) -> (i32, i32, i32, i32) {
    %c0_i32 = arith.constant 0 : i32
    %c0_i32_0 = arith.constant 0 : i32
    %c0_i32_1 = arith.constant 0 : i32
    return %arg0, %arg1, %c0_i32, %c0_i32_0 : i32, i32, i32, i32
  }
}

</mosaic_0001>

<llo_original>
// kernel: simple_autoencoder_forward.1
$region0: #{simple_autoencoder_forward.1}
  #allocation0 [shape = 'u32[]', space=smem, size = 0x4, offset = 0x4, fixed_abs, tag = 'smem constant byte address 0x4 - core index']
  #allocation1 [shape = 'u32[144,128]{1,0:T(1,128)}', space=vmem, size = 0x12000, scoped, tag = 'internal scratch']
  %s0 = inlined_call_operand.hbm [shape: f32[2,64,16], index: 0, kind: input, shape index: {}]
  %s1 = inlined_call_operand.vmem [shape: f32[64,32], index: 1, kind: input, shape index: {}]
  %s2 = inlined_call_operand.vmem [shape: f32[1,32], index: 2, kind: input, shape index: {}]
  %s3 = inlined_call_operand.vmem [shape: f32[32,64], index: 3, kind: input, shape index: {}]
  %s4 = inlined_call_operand.vmem [shape: f32[1,64], index: 4, kind: input, shape index: {}]
  %s5 = inlined_call_operand.vmem [shape: f32[32,64], index: 5, kind: input, shape index: {}]
  %s6 = inlined_call_operand.vmem [shape: f32[1,64], index: 6, kind: input, shape index: {}]
  %s7 = inlined_call_operand.hbm [shape: f32[2,16,64], index: 7, kind: output, shape index: {0}]
  %s8 = inlined_call_operand.vmem [shape: f32[2,1,1,128], index: 8, kind: output, shape index: {1}]
  %9 = xla_tuple %s7, %s8
  %s10 = sld [smem:[#allocation0]]
  $region73: #{simple_autoencoder_forward.1} parent=0
    _
  %s12 = ssub.s32 1, %s10
  %s13 = scalar_select 0, %s12, %s10
  $region1: #{simple_autoencoder_forward.1} parent=0
    #allocation2 [shape = 'u8[65536]{0}', space=vmem, size = 0x10000, scoped, tag = 'input window, operand 0']
    #allocation3 [shape = 's32[2]{0}', space=sflag, size = 0x8, scoped, tag = 'scoped memory for simple_autoencoder_forward.1']
    #allocation4 [shape = 's32[2]{0}', space=sflag, size = 0x8, scoped, tag = 'scoped memory for simple_autoencoder_forward.1']
    #allocation5 [shape = 'u8[16384]{0}', space=vmem, size = 0x4000, scoped, tag = 'output window, operand 0']
    %14 = vsyncpa [#allocation3], 0
    %s15 = scalar_lea.sflag [#allocation3], 1
    %16 = vsyncpa %s15, 0
    %17 = vsyncpa [#allocation4], 0
    %s18 = scalar_lea.sflag [#allocation4], 1
    %19 = vsyncpa %s18, 0
    loop: start=0, step=1, limit=4
    $region2: #{simple_autoencoder_forward.1} parent=1 // loop_pre_header
      _
    $region3: #{simple_autoencoder_forward.1} parent=1 // loop_header
      %s21 = sphi 0, %s25
      %p22 = scmp.ge.s32.totalorder %s21, 4
      %s28 = sphi 0, %s40
      %s29 = sphi 0, %s36
      %s30 = sphi 0, %s28
      %s31 = sphi 0, %s29
      %s32 = sphi 0, %s30
      %s33 = sphi 0, %s31
      %s45 = sphi 0, %s47
      %s48 = sphi 0, %s45
      %s49 = sphi 0, %s48
      %s65 = sphi 0, %s49
      %s69 = sphi 0, %s69
      %s71 = sphi 0, %s69
      %s72 = sphi 0, %s71
      %s86 = sphi 0, %s72
      %s90 = sphi 0, %s90
      %s92 = sphi 0, %s90
      %s93 = sphi 0, %s92
      %s107 = sphi 0, %s93
      %s111 = sphi 0, %s111
      %s113 = sphi 0, %s111
      %s114 = sphi 0, %s113
      %s128 = sphi 0, %s114
      %s132 = sphi 0, %s132
      %s134 = sphi 0, %s132
      %s135 = sphi 0, %s134
      %s149 = sphi 0, %s135
      %s153 = sphi 0, %s153
      %s155 = sphi 0, %s153
      %s156 = sphi 0, %s155
      %s170 = sphi 0, %s156
      %s174 = sphi 0, %s174
      %s176 = sphi 0, %s174
      %s177 = sphi 0, %s176
      %s191 = sphi 0, %s177
      %s199 = sphi 0, %s201
      %s202 = sphi 0, %s199
      %s203 = sphi 0, %s202
      %s219 = sphi 0, %s203
      %s227 = sphi 0, %s229
      %s230 = sphi 0, %s227
      %s231 = sphi 0, %s230
      %s247 = sphi 0, %s231
    $region4: #{simple_autoencoder_forward.1} parent=1 // loop_header_branch
      %24 = sbr.rel (%p22) target = $region8
    $region5: #{simple_autoencoder_forward.1} parent=1 // loop_body
      %s26 = ssub.s32 %s21, 1
      %s27 = ssub.s32 %s21, 2
      %s34 = sadd.s32 1, %s29
      %p35 = scmp.ge.s32.totalorder %s34, 1
      %s36 = scalar_select %p35, 0, %s34
      %s37 = sadd.s32 1, %s28
      %s38 = scalar_select %p35, %s37, %s28
      %p39 = scmp.ge.s32.totalorder %s38, 2
      %s40 = scalar_select %p39, 0, %s38
      %s41 = ssub.s32 %s28, %s40
      %s42 = ssub.s32 %s29, %s36
      %s43 = sor.u32 %s41, %s42
      %p44 = scmp.eq.s32.totalorder %s43, 0
      %s46 = sadd.s32 %s45, 1
      %s47 = scalar_select %p44, %s45, %s46
      %p50 = pneg %p44
      %p51 = scmp.eq.s32.totalorder %s21, 1
      %p52 = por %p50, %p51
      %p53 = scmp.ne.s32.totalorder %s45, %s48
      %p54 = scmp.eq.s32.totalorder %s21, 0
      %p55 = por %p53, %p54
      %p56 = scmp.ne.s32.totalorder %s45, %s48
      %p57 = scmp.eq.s32.totalorder %s26, 1
      %p58 = por %p56, %p57
      %p59 = scmp.ne.s32.totalorder %s48, %s49
      %p60 = scmp.eq.s32.totalorder %s26, 0
      %p61 = por %p59, %p60
      %p62 = scmp.ne.s32.totalorder %s48, %s49
      %p63 = scmp.eq.s32.totalorder %s27, 1
      %p64 = por %p62, %p63
      %p66 = scmp.ne.s32.totalorder %s49, %s65
      %p67 = scmp.eq.s32.totalorder %s27, 0
      %p68 = por %p66, %p67
      %s70 = sadd.s32 %s69, 1
      %p73 = scmp.eq.s32.totalorder %s21, 1
      %p74 = scmp.ne.s32.totalorder %s69, %s71
      %p75 = scmp.eq.s32.totalorder %s21, 0
      %p76 = por %p74, %p75
      %p77 = scmp.ne.s32.totalorder %s69, %s71
      %p78 = scmp.eq.s32.totalorder %s26, 1
      %p79 = por %p77, %p78
      %p80 = scmp.ne.s32.totalorder %s71, %s72
      %p81 = scmp.eq.s32.totalorder %s26, 0
      %p82 = por %p80, %p81
      %p83 = scmp.ne.s32.totalorder %s71, %s72
      %p84 = scmp.eq.s32.totalorder %s27, 1
      %p85 = por %p83, %p84
      %p87 = scmp.ne.s32.totalorder %s72, %s86
      %p88 = scmp.eq.s32.totalorder %s27, 0
      %p89 = por %p87, %p88
      %s91 = sadd.s32 %s90, 1
      %p94 = scmp.eq.s32.totalorder %s21, 1
      %p95 = scmp.ne.s32.totalorder %s90, %s92
      %p96 = scmp.eq.s32.totalorder %s21, 0
      %p97 = por %p95, %p96
      %p98 = scmp.ne.s32.totalorder %s90, %s92
      %p99 = scmp.eq.s32.totalorder %s26, 1
      %p100 = por %p98, %p99
      %p101 = scmp.ne.s32.totalorder %s92, %s93
      %p102 = scmp.eq.s32.totalorder %s26, 0
      %p103 = por %p101, %p102
      %p104 = scmp.ne.s32.totalorder %s92, %s93
      %p105 = scmp.eq.s32.totalorder %s27, 1
      %p106 = por %p104, %p105
      %p108 = scmp.ne.s32.totalorder %s93, %s107
      %p109 = scmp.eq.s32.totalorder %s27, 0
      %p110 = por %p108, %p109
      %s112 = sadd.s32 %s111, 1
      %p115 = scmp.eq.s32.totalorder %s21, 1
      %p116 = scmp.ne.s32.totalorder %s111, %s113
      %p117 = scmp.eq.s32.totalorder %s21, 0
      %p118 = por %p116, %p117
      %p119 = scmp.ne.s32.totalorder %s111, %s113
      %p120 = scmp.eq.s32.totalorder %s26, 1
      %p121 = por %p119, %p120
      %p122 = scmp.ne.s32.totalorder %s113, %s114
      %p123 = scmp.eq.s32.totalorder %s26, 0
      %p124 = por %p122, %p123
      %p125 = scmp.ne.s32.totalorder %s113, %s114
      %p126 = scmp.eq.s32.totalorder %s27, 1
      %p127 = por %p125, %p126
      %p129 = scmp.ne.s32.totalorder %s114, %s128
      %p130 = scmp.eq.s32.totalorder %s27, 0
      %p131 = por %p129, %p130
      %s133 = sadd.s32 %s132, 1
      %p136 = scmp.eq.s32.totalorder %s21, 1
      %p137 = scmp.ne.s32.totalorder %s132, %s134
      %p138 = scmp.eq.s32.totalorder %s21, 0
      %p139 = por %p137, %p138
      %p140 = scmp.ne.s32.totalorder %s132, %s134
      %p141 = scmp.eq.s32.totalorder %s26, 1
      %p142 = por %p140, %p141
      %p143 = scmp.ne.s32.totalorder %s134, %s135
      %p144 = scmp.eq.s32.totalorder %s26, 0
      %p145 = por %p143, %p144
      %p146 = scmp.ne.s32.totalorder %s134, %s135
      %p147 = scmp.eq.s32.totalorder %s27, 1
      %p148 = por %p146, %p147
      %p150 = scmp.ne.s32.totalorder %s135, %s149
      %p151 = scmp.eq.s32.totalorder %s27, 0
      %p152 = por %p150, %p151
      %s154 = sadd.s32 %s153, 1
      %p157 = scmp.eq.s32.totalorder %s21, 1
      %p158 = scmp.ne.s32.totalorder %s153, %s155
      %p159 = scmp.eq.s32.totalorder %s21, 0
      %p160 = por %p158, %p159
      %p161 = scmp.ne.s32.totalorder %s153, %s155
      %p162 = scmp.eq.s32.totalorder %s26, 1
      %p163 = por %p161, %p162
      %p164 = scmp.ne.s32.totalorder %s155, %s156
      %p165 = scmp.eq.s32.totalorder %s26, 0
      %p166 = por %p164, %p165
      %p167 = scmp.ne.s32.totalorder %s155, %s156
      %p168 = scmp.eq.s32.totalorder %s27, 1
      %p169 = por %p167, %p168
      %p171 = scmp.ne.s32.totalorder %s156, %s170
      %p172 = scmp.eq.s32.totalorder %s27, 0
      %p173 = por %p171, %p172
      %s175 = sadd.s32 %s174, 1
      %p178 = scmp.eq.s32.totalorder %s21, 1
      %p179 = scmp.ne.s32.totalorder %s174, %s176
      %p180 = scmp.eq.s32.totalorder %s21, 0
      %p181 = por %p179, %p180
      %p182 = scmp.ne.s32.totalorder %s174, %s176
      %p183 = scmp.eq.s32.totalorder %s26, 1
      %p184 = por %p182, %p183
      %p185 = scmp.ne.s32.totalorder %s176, %s177
      %p186 = scmp.eq.s32.totalorder %s26, 0
      %p187 = por %p185, %p186
      %p188 = scmp.ne.s32.totalorder %s176, %s177
      %p189 = scmp.eq.s32.totalorder %s27, 1
      %p190 = por %p188, %p189
      %p192 = scmp.ne.s32.totalorder %s177, %s191
      %p193 = scmp.eq.s32.totalorder %s27, 0
      %p194 = por %p192, %p193
      %s195 = ssub.s32 %s28, %s40
      %s196 = ssub.s32 %s29, %s36
      %s197 = sor.u32 %s195, %s196
      %p198 = scmp.eq.s32.totalorder %s197, 0
      %s200 = sadd.s32 %s199, 1
      %s201 = scalar_select %p198, %s199, %s200
      %p204 = pneg %p198
      %p205 = scmp.eq.s32.totalorder %s21, 1
      %p206 = por %p204, %p205
      %p207 = scmp.ne.s32.totalorder %s199, %s202
      %p208 = scmp.eq.s32.totalorder %s21, 0
      %p209 = por %p207, %p208
      %p210 = scmp.ne.s32.totalorder %s199, %s202
      %p211 = scmp.eq.s32.totalorder %s26, 1
      %p212 = por %p210, %p211
      %p213 = scmp.ne.s32.totalorder %s202, %s203
      %p214 = scmp.eq.s32.totalorder %s26, 0
      %p215 = por %p213, %p214
      %p216 = scmp.ne.s32.totalorder %s202, %s203
      %p217 = scmp.eq.s32.totalorder %s27, 1
      %p218 = por %p216, %p217
      %p220 = scmp.ne.s32.totalorder %s203, %s219
      %p221 = scmp.eq.s32.totalorder %s27, 0
      %p222 = por %p220, %p221
      %s223 = ssub.s32 %s28, %s40
      %s224 = ssub.s32 %s29, %s36
      %s225 = sor.u32 %s223, %s224
      %p226 = scmp.eq.s32.totalorder %s225, 0
      %s228 = sadd.s32 %s227, 1
      %s229 = scalar_select %p226, %s227, %s228
      %p232 = pneg %p226
      %p233 = scmp.eq.s32.totalorder %s21, 1
      %p234 = por %p232, %p233
      %p235 = scmp.ne.s32.totalorder %s227, %s230
      %p236 = scmp.eq.s32.totalorder %s21, 0
      %p237 = por %p235, %p236
      %p238 = scmp.ne.s32.totalorder %s227, %s230
      %p239 = scmp.eq.s32.totalorder %s26, 1
      %p240 = por %p238, %p239
      %p241 = scmp.ne.s32.totalorder %s230, %s231
      %p242 = scmp.eq.s32.totalorder %s26, 0
      %p243 = por %p241, %p242
      %p244 = scmp.ne.s32.totalorder %s230, %s231
      %p245 = scmp.eq.s32.totalorder %s27, 1
      %p246 = por %p244, %p245
      %p248 = scmp.ne.s32.totalorder %s231, %s247
      %p249 = scmp.eq.s32.totalorder %s27, 0
      %p250 = por %p248, %p249
      %p251 = scmp.le.s32.totalorder 1, %s21
      %p252 = scmp.lt.s32.totalorder %s21, 3
      %p253 = pnand %p251, %p252
      %p254 = pneg %p253
      // Predicated region
      $region9: #{simple_autoencoder_forward.1} parent=5 // pred_check
        _
      $region10: #{simple_autoencoder_forward.1} parent=5 // pred_check_branch
        %256 = sbr.rel (%p253) target = $region12
      $region11: #{simple_autoencoder_forward.1} parent=5 // pred_region
        %s257 = ssub.s32 %s21, 1
        // Predicated region
        $region13: #{simple_autoencoder_forward.1} parent=11 // pred_check
          %p258 = pneg %p82
        $region14: #{simple_autoencoder_forward.1} parent=11 // pred_check_branch
          %260 = sbr.rel (%p258) target = $region16
        $region15: #{simple_autoencoder_forward.1} parent=11 // pred_region
          _
        $region16: #{simple_autoencoder_forward.1} parent=11 // pred_fallthru
          _
        // Predicated region
        $region17: #{simple_autoencoder_forward.1} parent=11 // pred_check
          %p261 = pneg %p103
        $region18: #{simple_autoencoder_forward.1} parent=11 // pred_check_branch
          %263 = sbr.rel (%p261) target = $region20
        $region19: #{simple_autoencoder_forward.1} parent=11 // pred_region
          _
        $region20: #{simple_autoencoder_forward.1} parent=11 // pred_fallthru
          _
        // Predicated region
        $region21: #{simple_autoencoder_forward.1} parent=11 // pred_check
          %p264 = pneg %p124
        $region22: #{simple_autoencoder_forward.1} parent=11 // pred_check_branch
          %266 = sbr.rel (%p264) target = $region24
        $region23: #{simple_autoencoder_forward.1} parent=11 // pred_region
          _
        $region24: #{simple_autoencoder_forward.1} parent=11 // pred_fallthru
          _
        // Predicated region
        $region25: #{simple_autoencoder_forward.1} parent=11 // pred_check
          %p267 = pneg %p145
        $region26: #{simple_autoencoder_forward.1} parent=11 // pred_check_branch
          %269 = sbr.rel (%p267) target = $region28
        $region27: #{simple_autoencoder_forward.1} parent=11 // pred_region
          _
        $region28: #{simple_autoencoder_forward.1} parent=11 // pred_fallthru
          _
        // Predicated region
        $region29: #{simple_autoencoder_forward.1} parent=11 // pred_check
          %p270 = pneg %p166
        $region30: #{simple_autoencoder_forward.1} parent=11 // pred_check_branch
          %272 = sbr.rel (%p270) target = $region32
        $region31: #{simple_autoencoder_forward.1} parent=11 // pred_region
          _
        $region32: #{simple_autoencoder_forward.1} parent=11 // pred_fallthru
          _
        // Predicated region
        $region33: #{simple_autoencoder_forward.1} parent=11 // pred_check
          %p273 = pneg %p187
        $region34: #{simple_autoencoder_forward.1} parent=11 // pred_check_branch
          %275 = sbr.rel (%p273) target = $region36
        $region35: #{simple_autoencoder_forward.1} parent=11 // pred_region
          _
        $region36: #{simple_autoencoder_forward.1} parent=11 // pred_fallthru
          _
      $region12: #{simple_autoencoder_forward.1} parent=5 // pred_fallthru
        _
      %p276 = scmp.lt.s32.totalorder %s21, 2
      // Predicated region
      $region37: #{simple_autoencoder_forward.1} parent=5 // pred_check
        %p277 = pneg %p276
      $region38: #{simple_autoencoder_forward.1} parent=5 // pred_check_branch
        %279 = sbr.rel (%p277) target = $region40
      $region39: #{simple_autoencoder_forward.1} parent=5 // pred_region
        // Predicated region
        $region41: #{simple_autoencoder_forward.1} parent=39 // pred_check
          %p280 = pneg %p55
        $region42: #{simple_autoencoder_forward.1} parent=39 // pred_check_branch
          %282 = sbr.rel (%p280) target = $region44
        $region43: #{simple_autoencoder_forward.1} parent=39 // pred_region
          %s283 = sand.u32 %s45, 1
          %s284 = scalar_lea.sflag [#allocation3], %s283
          %s285 = sand.u32 %s45, 1
          %s286 = smul.addr %s285, 64
          %s287 = scalar_lea.vmem [#allocation2], %s286
          %s289 = ssub.s32 1024, 1024
          %290 = vsyncadd %s284, %s289
          %s291 = smul.addr %s28, 8
          %s292 = sadd.s32 %s29, %s291
          %s293 = smul.addr %s292, 128
          %s294 = scalar_lea.hbm %s0, %s293
          %s295 = sshll.u32 %s287, 4
          %s296 = int_to_ptr.vmem [resolvable:$true] %s295
          %301 = dma.hbm_to_vmem [thread:$0]  %s294, 1024, %s296, %s284, 128, 128, 8
        $region44: #{simple_autoencoder_forward.1} parent=39 // pred_fallthru
          _
      $region40: #{simple_autoencoder_forward.1} parent=5 // pred_fallthru
        _
      %p302 = scmp.le.s32.totalorder 1, %s21
      %p303 = scmp.lt.s32.totalorder %s21, 3
      %p304 = pnand %p302, %p303
      %p305 = pneg %p304
      // Predicated region
      $region45: #{simple_autoencoder_forward.1} parent=5 // pred_check
        _
      $region46: #{simple_autoencoder_forward.1} parent=5 // pred_check_branch
        %307 = sbr.rel (%p304) target = $region48
      $region47: #{simple_autoencoder_forward.1} parent=5 // pred_region
        %s308 = ssub.s32 %s21, 1
        %s309 = sand.u32 %s48, 1
        %s310 = scalar_lea.sflag [#allocation3], %s309
        %s311 = sand.u32 %s48, 1
        %s312 = smul.addr %s311, 64
        %s313 = scalar_lea.vmem [#allocation2], %s312
        // Predicated region
        $region49: #{simple_autoencoder_forward.1} parent=47 // pred_check
          %p314 = pneg %p61
        $region50: #{simple_autoencoder_forward.1} parent=47 // pred_check_branch
          %316 = sbr.rel (%p314) target = $region52
        $region51: #{simple_autoencoder_forward.1} parent=47 // pred_region
          %317 = dma.done %s310, 1024
        $region52: #{simple_autoencoder_forward.1} parent=47 // pred_fallthru
          _
        %s318 = sand.u32 %s48, 1
        %s319 = scalar_lea.sflag [#allocation3], %s318
        %s320 = sand.u32 %s48, 1
        %s321 = smul.addr %s320, 64
        %s322 = scalar_lea.vmem [#allocation2], %s321
        %p323 = pneg %p61
        %p324 = pneg %p58
        %p325 = pneg %p82
        %p326 = pneg %p79
        %p327 = pneg %p103
        %p328 = pneg %p100
        %p329 = pneg %p124
        %p330 = pneg %p121
        %p331 = pneg %p145
        %p332 = pneg %p142
        %p333 = pneg %p166
        %p334 = pneg %p163
        %p335 = pneg %p187
        %p336 = pneg %p184
        %p337 = pneg %p215
        %p338 = pneg %p212
        %s339 = sand.u32 %s202, 1
        %s340 = scalar_lea.sflag [#allocation4], %s339
        %s341 = sand.u32 %s202, 1
        %s342 = smul.addr %s341, 16
        %s343 = scalar_lea.vmem [#allocation5], %s342
        %p344 = pneg %p243
        %p345 = pneg %p240
        %p346 = scmp.lt.s32.totalorder %s30, 1
        %s347 = scalar_select %p346, %s30, 1
        %p348 = scmp.lt.s32.totalorder %s31, 0
        %s349 = scalar_select %p348, %s31, 0
        %s350 = sadd.s32 %s349, %s347
        %s351 = scalar_lea.vmem %s8, %s350
        %s352 = smul.u32 2, %s31
        %p353 = scmp.lt.s32.totalorder %s30, 1
        %s354 = scalar_select %p353, %s30, 1
        %p355 = scmp.lt.s32.totalorder %s31, 0
        %s356 = scalar_select %p355, %s31, 0
        %s357 = sadd.s32 %s356, %s354
        %s358 = scalar_lea.vmem %s8, %s357
        %v359 = vld [vmem:[%s313] sm:$0xff]
        %v360 = vld [vmem:[%s313 + $0x8] sm:$0xff]
        %v361 = vld [vmem:[%s313 + $0x10] sm:$0xff]
        %v362 = vld [vmem:[%s313 + $0x18] sm:$0xff]
        %v363 = vld [vmem:[%s313 + $0x20] sm:$0xff]
        %v364 = vld [vmem:[%s313 + $0x28] sm:$0xff]
        %v365 = vld [vmem:[%s313 + $0x30] sm:$0xff]
        %v366 = vld [vmem:[%s313 + $0x38] sm:$0xff]
        %367 = vxpose.xlu0.b32.start [1/16] %v359, 128
        %368 = vxpose.xlu0.b32.cont [2/16] %v360, 128
        %369 = vxpose.xlu0.b32.cont [3/16] %v361, 128
        %370 = vxpose.xlu0.b32.cont [4/16] %v362, 128
        %371 = vxpose.xlu0.b32.cont [5/16] %v363, 128
        %372 = vxpose.xlu0.b32.cont [6/16] %v364, 128
        %373 = vxpose.xlu0.b32.cont [7/16] %v365, 128
        %374 = vxpose.xlu0.b32.cont [8/16] %v366, 128
        %375 = vxpose.xlu0.b32.cont [9/16] 0.0, 128
        %376 = vxpose.xlu0.b32.cont [10/16] 0.0, 128
        %377 = vxpose.xlu0.b32.cont [11/16] 0.0, 128
        %378 = vxpose.xlu0.b32.cont [12/16] 0.0, 128
        %379 = vxpose.xlu0.b32.cont [13/16] 0.0, 128
        %380 = vxpose.xlu0.b32.cont [14/16] 0.0, 128
        %381 = vxpose.xlu0.b32.cont [15/16] 0.0, 128
        %382 = vxpose.xlu0.b32.end [16/16] 0.0, 128
        %v383 = vpop.trf.xlu0
        %v384 = vpop.trf.xlu0
        %v385 = vpop.trf.xlu0
        %v386 = vpop.trf.xlu0
        %v387 = vpop.trf.xlu0
        %v388 = vpop.trf.xlu0
        %v389 = vpop.trf.xlu0
        %v390 = vpop.trf.xlu0
        %v391 = vpop.trf.xlu0
        %v392 = vpop.trf.xlu0
        %v393 = vpop.trf.xlu0
        %v394 = vpop.trf.xlu0
        %v395 = vpop.trf.xlu0
        %v396 = vpop.trf.xlu0
        %v397 = vpop.trf.xlu0
        %v398 = vpop.trf.xlu0
        %v399 = vld [vmem:[%s1] sm:$0xff]
        %v400 = vld [vmem:[%s1 + $0x8] sm:$0xff]
        %v401 = vld [vmem:[%s1 + $0x10] sm:$0xff]
        %v402 = vld [vmem:[%s1 + $0x18] sm:$0xff]
        %v403 = vld [vmem:[%s1 + $0x20] sm:$0xff]
        %v404 = vld [vmem:[%s1 + $0x28] sm:$0xff]
        %v405 = vld [vmem:[%s1 + $0x30] sm:$0xff]
        %v406 = vld [vmem:[%s1 + $0x38] sm:$0xff]
        %v407 = vld [vmem:[%s2] sm:$0x1]
        %v409 = vlaneseq
        %v410 = vshrl.u32 %v409, 7
        %v411 = vsub.s32 0, %v410
        %v412 = vrot.slane %v407, %v411
        %vm414 = vcmask 523264
        %v416 = vsel %vm414, %v383, 0
        %v419 = vsel %vm414, %v384, 0
        %421 = vmatprep.subr.mxu0 0.0
        %422 = vmatpush1.msra.mxu0 0.0
        %423 = vmatprep.subr.mxu0 0.0
        %424 = vmatpush1.msra.mxu0 0.0
        %425 = vmatprep.subr.mxu0 0.0
        %426 = vmatpush1.msra.mxu0 0.0
        %427 = vmatprep.subr.mxu0 0.0
        %428 = vmatpush1.msra.mxu0 0.0
        %429 = vmatprep.subr.mxu0 0.0
        %430 = vmatpush1.msra.mxu0 0.0
        %431 = vmatprep.subr.mxu0 0.0
        %432 = vmatpush1.msra.mxu0 0.0
        %433 = vmatprep.subr.mxu0 0.0
        %434 = vmatpush1.msra.mxu0 0.0
        %435 = vmatprep.subr.mxu0 0.0
        %436 = vmatpush1.msra.mxu0 0.0
        %437 = vmatprep.subr.mxu0 0.0
        %438 = vmatpush1.msra.mxu0 %v406
        %439 = vmatprep.subr.mxu0 0.0
        %440 = vmatpush1.msra.mxu0 %v405
        %441 = vmatprep.subr.mxu0 0.0
        %442 = vmatpush1.msra.mxu0 %v404
        %443 = vmatprep.subr.mxu0 0.0
        %444 = vmatpush1.msra.mxu0 %v403
        %445 = vmatprep.subr.mxu0 0.0
        %446 = vmatpush1.msra.mxu0 %v402
        %447 = vmatprep.subr.mxu0 0.0
        %448 = vmatpush1.msra.mxu0 %v401
        %449 = vmatprep.subr.mxu0 0.0
        %450 = vmatpush1.msra.mxu0 %v400
        %451 = vmatprep.subr.mxu0 0.0
        %452 = vmatpush1.msra.mxu0 %v399
        %453 = vmatprep.subr.mxu0 0.0
        %454 = vmatpush2.msra.mxu0 0.0
        %455 = vmatprep.subr.mxu0 0.0
        %456 = vmatpush2.msra.mxu0 0.0
        %457 = vmatprep.subr.mxu0 0.0
        %458 = vmatpush2.msra.mxu0 0.0
        %459 = vmatprep.subr.mxu0 0.0
        %460 = vmatpush2.msra.mxu0 0.0
        %461 = vmatprep.subr.mxu0 0.0
        %462 = vmatpush2.msra.mxu0 0.0
        %463 = vmatprep.subr.mxu0 0.0
        %464 = vmatpush2.msra.mxu0 0.0
        %465 = vmatprep.subr.mxu0 0.0
        %466 = vmatpush2.msra.mxu0 0.0
        %467 = vmatprep.subr.mxu0 0.0
        %468 = vmatpush2.msra.mxu0 0.0
        %469 = vmatprep.subr.mxu0 0.0
        %470 = vmatpush2.msra.mxu0 0.0
        %471 = vmatprep.subr.mxu0 0.0
        %472 = vmatpush2.msra.mxu0 0.0
        %473 = vmatprep.subr.mxu0 0.0
        %474 = vmatpush2.msra.mxu0 0.0
        %475 = vmatprep.subr.mxu0 0.0
        %476 = vmatpush2.msra.mxu0 0.0
        %477 = vmatprep.subr.mxu0 0.0
        %478 = vmatpush2.msra.mxu0 0.0
        %479 = vmatprep.subr.mxu0 0.0
        %480 = vmatpush2.msra.mxu0 0.0
        %481 = vmatprep.subr.mxu0 0.0
        %482 = vmatpush2.msra.mxu0 0.0
        %483 = vmatprep.subr.mxu0 0.0
        %484 = vmatpush2.msra.mxu0 0.0
        %485 = vmatprep.mubr.f32.mxu0 0.0
        %486 = vmatmul.mubr.f32.gmra.mxu0 %v416
        %v487 = vpop.f32.mrf.mxu0
        %v488 = vadd.f32 %v412, %v487
        %v489 = vpop.f32.mrf.mxu0
        %490 = vmatprep.mubr.f32.mxu0 0.0
        %491 = vmatmul.mubr.f32.gmra.mxu0 %v419
        %v492 = vpop.f32.mrf.mxu0
        %v493 = vadd.f32 %v412, %v492
        %v494 = vpop.f32.mrf.mxu0
        %495 = vdwg.mxu0
        %v496 = vld [vmem:[%s3] sm:$0xff]
        %v497 = vld [vmem:[%s3 + $0x8] sm:$0xff]
        %v498 = vld [vmem:[%s3 + $0x10] sm:$0xff]
        %v499 = vld [vmem:[%s3 + $0x18] sm:$0xff]
        %v500 = vld [vmem:[%s4] sm:$0x1]
        %v502 = vlaneseq
        %v503 = vshrl.u32 %v502, 7
        %v504 = vsub.s32 0, %v503
        %v505 = vrot.slane %v500, %v504
        %vm507 = vcmask 261120
        %v509 = vsel %vm507, %v488, 0
        %v512 = vsel %vm507, %v493, 0
        %514 = vmatprep.subr.mxu0 0.0
        %515 = vmatpush1.msra.mxu0 0.0
        %516 = vmatprep.subr.mxu0 0.0
        %517 = vmatpush1.msra.mxu0 0.0
        %518 = vmatprep.subr.mxu0 0.0
        %519 = vmatpush1.msra.mxu0 0.0
        %520 = vmatprep.subr.mxu0 0.0
        %521 = vmatpush1.msra.mxu0 0.0
        %522 = vmatprep.subr.mxu0 0.0
        %523 = vmatpush1.msra.mxu0 0.0
        %524 = vmatprep.subr.mxu0 0.0
        %525 = vmatpush1.msra.mxu0 0.0
        %526 = vmatprep.subr.mxu0 0.0
        %527 = vmatpush1.msra.mxu0 0.0
        %528 = vmatprep.subr.mxu0 0.0
        %529 = vmatpush1.msra.mxu0 0.0
        %530 = vmatprep.subr.mxu0 0.0
        %531 = vmatpush1.msra.mxu0 0.0
        %532 = vmatprep.subr.mxu0 0.0
        %533 = vmatpush1.msra.mxu0 0.0
        %534 = vmatprep.subr.mxu0 0.0
        %535 = vmatpush1.msra.mxu0 0.0
        %536 = vmatprep.subr.mxu0 0.0
        %537 = vmatpush1.msra.mxu0 0.0
        %538 = vmatprep.subr.mxu0 0.0
        %539 = vmatpush1.msra.mxu0 %v499
        %540 = vmatprep.subr.mxu0 0.0
        %541 = vmatpush1.msra.mxu0 %v498
        %542 = vmatprep.subr.mxu0 0.0
        %543 = vmatpush1.msra.mxu0 %v497
        %544 = vmatprep.subr.mxu0 0.0
        %545 = vmatpush1.msra.mxu0 %v496
        %546 = vmatprep.subr.mxu0 0.0
        %547 = vmatpush2.msra.mxu0 0.0
        %548 = vmatprep.subr.mxu0 0.0
        %549 = vmatpush2.msra.mxu0 0.0
        %550 = vmatprep.subr.mxu0 0.0
        %551 = vmatpush2.msra.mxu0 0.0
        %552 = vmatprep.subr.mxu0 0.0
        %553 = vmatpush2.msra.mxu0 0.0
        %554 = vmatprep.subr.mxu0 0.0
        %555 = vmatpush2.msra.mxu0 0.0
        %556 = vmatprep.subr.mxu0 0.0
        %557 = vmatpush2.msra.mxu0 0.0
        %558 = vmatprep.subr.mxu0 0.0
        %559 = vmatpush2.msra.mxu0 0.0
        %560 = vmatprep.subr.mxu0 0.0
        %561 = vmatpush2.msra.mxu0 0.0
        %562 = vmatprep.subr.mxu0 0.0
        %563 = vmatpush2.msra.mxu0 0.0
        %564 = vmatprep.subr.mxu0 0.0
        %565 = vmatpush2.msra.mxu0 0.0
        %566 = vmatprep.subr.mxu0 0.0
        %567 = vmatpush2.msra.mxu0 0.0
        %568 = vmatprep.subr.mxu0 0.0
        %569 = vmatpush2.msra.mxu0 0.0
        %570 = vmatprep.subr.mxu0 0.0
        %571 = vmatpush2.msra.mxu0 0.0
        %572 = vmatprep.subr.mxu0 0.0
        %573 = vmatpush2.msra.mxu0 0.0
        %574 = vmatprep.subr.mxu0 0.0
        %575 = vmatpush2.msra.mxu0 0.0
        %576 = vmatprep.subr.mxu0 0.0
        %577 = vmatpush2.msra.mxu0 0.0
        %578 = vmatprep.mubr.f32.mxu0 0.0
        %579 = vmatmul.mubr.f32.gmra.mxu0 %v509
        %v580 = vpop.f32.mrf.mxu0
        %v581 = vadd.f32 %v505, %v580
        %v582 = vpop.f32.mrf.mxu0
        %583 = vmatprep.mubr.f32.mxu0 0.0
        %584 = vmatmul.mubr.f32.gmra.mxu0 %v512
        %v585 = vpop.f32.mrf.mxu0
        %v586 = vadd.f32 %v505, %v585
        %v587 = vpop.f32.mrf.mxu0
        %588 = vdwg.mxu0
        %589 = vst.msk [vmem:[%s343] sm:$0xff] %vm414, %v581
        %590 = vst.msk [vmem:[%s343 + $0x8] sm:$0xff] %vm414, %v586
        %v591 = vld [vmem:[%s5] sm:$0xff]
        %v592 = vld [vmem:[%s5 + $0x8] sm:$0xff]
        %v593 = vld [vmem:[%s5 + $0x10] sm:$0xff]
        %v594 = vld [vmem:[%s5 + $0x18] sm:$0xff]
        %v595 = vld [vmem:[%s6] sm:$0x1]
        %v597 = vlaneseq
        %v598 = vshrl.u32 %v597, 7
        %v599 = vsub.s32 0, %v598
        %v600 = vrot.slane %v595, %v599
        %602 = vmatprep.subr.mxu0 0.0
        %603 = vmatpush1.msra.mxu0 0.0
        %604 = vmatprep.subr.mxu0 0.0
        %605 = vmatpush1.msra.mxu0 0.0
        %606 = vmatprep.subr.mxu0 0.0
        %607 = vmatpush1.msra.mxu0 0.0
        %608 = vmatprep.subr.mxu0 0.0
        %609 = vmatpush1.msra.mxu0 0.0
        %610 = vmatprep.subr.mxu0 0.0
        %611 = vmatpush1.msra.mxu0 0.0
        %612 = vmatprep.subr.mxu0 0.0
        %613 = vmatpush1.msra.mxu0 0.0
        %614 = vmatprep.subr.mxu0 0.0
        %615 = vmatpush1.msra.mxu0 0.0
        %616 = vmatprep.subr.mxu0 0.0
        %617 = vmatpush1.msra.mxu0 0.0
        %618 = vmatprep.subr.mxu0 0.0
        %619 = vmatpush1.msra.mxu0 0.0
        %620 = vmatprep.subr.mxu0 0.0
        %621 = vmatpush1.msra.mxu0 0.0
        %622 = vmatprep.subr.mxu0 0.0
        %623 = vmatpush1.msra.mxu0 0.0
        %624 = vmatprep.subr.mxu0 0.0
        %625 = vmatpush1.msra.mxu0 0.0
        %626 = vmatprep.subr.mxu0 0.0
        %627 = vmatpush1.msra.mxu0 %v594
        %628 = vmatprep.subr.mxu0 0.0
        %629 = vmatpush1.msra.mxu0 %v593
        %630 = vmatprep.subr.mxu0 0.0
        %631 = vmatpush1.msra.mxu0 %v592
        %632 = vmatprep.subr.mxu0 0.0
        %633 = vmatpush1.msra.mxu0 %v591
        %634 = vmatprep.subr.mxu0 0.0
        %635 = vmatpush2.msra.mxu0 0.0
        %636 = vmatprep.subr.mxu0 0.0
        %637 = vmatpush2.msra.mxu0 0.0
        %638 = vmatprep.subr.mxu0 0.0
        %639 = vmatpush2.msra.mxu0 0.0
        %640 = vmatprep.subr.mxu0 0.0
        %641 = vmatpush2.msra.mxu0 0.0
        %642 = vmatprep.subr.mxu0 0.0
        %643 = vmatpush2.msra.mxu0 0.0
        %644 = vmatprep.subr.mxu0 0.0
        %645 = vmatpush2.msra.mxu0 0.0
        %646 = vmatprep.subr.mxu0 0.0
        %647 = vmatpush2.msra.mxu0 0.0
        %648 = vmatprep.subr.mxu0 0.0
        %649 = vmatpush2.msra.mxu0 0.0
        %650 = vmatprep.subr.mxu0 0.0
        %651 = vmatpush2.msra.mxu0 0.0
        %652 = vmatprep.subr.mxu0 0.0
        %653 = vmatpush2.msra.mxu0 0.0
        %654 = vmatprep.subr.mxu0 0.0
        %655 = vmatpush2.msra.mxu0 0.0
        %656 = vmatprep.subr.mxu0 0.0
        %657 = vmatpush2.msra.mxu0 0.0
        %658 = vmatprep.subr.mxu0 0.0
        %659 = vmatpush2.msra.mxu0 0.0
        %660 = vmatprep.subr.mxu0 0.0
        %661 = vmatpush2.msra.mxu0 0.0
        %662 = vmatprep.subr.mxu0 0.0
        %663 = vmatpush2.msra.mxu0 0.0
        %664 = vmatprep.subr.mxu0 0.0
        %665 = vmatpush2.msra.mxu0 0.0
        %666 = vmatprep.mubr.f32.mxu0 0.0
        %667 = vmatmul.mubr.f32.gmra.mxu0 %v509
        %v668 = vpop.f32.mrf.mxu0
        %v669 = vadd.f32 %v600, %v668
        %v670 = vpop.f32.mrf.mxu0
        %671 = vmatprep.mubr.f32.mxu0 0.0
        %672 = vmatmul.mubr.f32.gmra.mxu0 %v512
        %v673 = vpop.f32.mrf.mxu0
        %v674 = vadd.f32 %v600, %v673
        %v675 = vpop.f32.mrf.mxu0
        %676 = vdwg.mxu0
        %s677 = smul.u32 %s31, 16
        %v678 = vlaneseq
        %v679 = vshrl.u32 %v678, 7
        %v680 = vadd.s32 %v679, 8
        %v681 = vstv %s677
        %v682 = vadd.s32 %v681, %v679
        %v683 = vadd.s32 %v681, %v680
        %vm684 = vcmp.lt.s32.totalorder %v682, 16
        %vm685 = vcmp.lt.s32.totalorder %v683, 16
        %v686 = vsub.f32 %v669, %v383
        %v687 = vsub.f32 %v674, %v384
        %v688 = vmul.f32 %v686, %v686
        %v689 = vmul.f32 %v687, %v687
        %v690 = vsel %vm684, 1, 0
        %v691 = vsel %vm685, 1, 0
        %vm692 = vcmp.eq.s32.totalorder %v690, 1
        %vm693 = vcmp.eq.s32.totalorder %v691, 1
        %v694 = vsel %vm692, %v688, 0.0
        %v695 = vsel %vm693, %v689, 0.0
        %v696 = vsel %vm414, %v694, 0.0
        %v697 = vsel %vm414, %v695, 0.0
        %v698 = vadd.f32 %v696, %v697
        %699 = vadd.xlane.f32.xlu0 %v698
        %v700 = vpop.xlane.xlu0 %699
        %v701 = vrot.slane %v700, 4
        %v702 = vadd.f32 %v700, %v701
        %v703 = vrot.slane %v702, 2
        %v704 = vadd.f32 %v702, %v703
        %v705 = vrot.slane %v704, 1
        %v706 = vadd.f32 %v704, %v705
        %s707 = vtos %v706
        %v708 = vstv %s707
        %709 = vst [vmem:[%s358] sm:$0x1] %v708
        %s710 = sand.u32 %s202, 1
        %s711 = scalar_lea.sflag [#allocation4], %s710
        %s712 = sand.u32 %s202, 1
        %s713 = smul.addr %s712, 16
        %s714 = scalar_lea.vmem [#allocation5], %s713
        %p715 = scmp.lt.s32.totalorder %s30, 1
        %s716 = scalar_select %p715, %s30, 1
        %p717 = scmp.lt.s32.totalorder %s31, 0
        %s718 = scalar_select %p717, %s31, 0
        %s719 = sadd.s32 %s718, %s716
        %s720 = scalar_lea.vmem %s8, %s719
        // Predicated region
        $region53: #{simple_autoencoder_forward.1} parent=47 // pred_check
          %p721 = pneg %p212
        $region54: #{simple_autoencoder_forward.1} parent=47 // pred_check_branch
          %723 = sbr.rel (%p721) target = $region56
        $region55: #{simple_autoencoder_forward.1} parent=47 // pred_region
          %s724 = smul.u32 2, %s31
          %s726 = ssub.s32 256, 256
          %727 = vsyncadd %s711, %s726
          %s728 = smul.addr %s30, 2
          %s729 = sadd.s32 %s724, %s728
          %s730 = smul.addr %s729, 128
          %s731 = scalar_lea.hbm %s7, %s730
          %s732 = sshll.u32 %s714, 4
          %s733 = int_to_ptr.vmem [resolvable:$true] %s732
          %738 = dma.vmem_to_hbm [thread:$0]  %s733, 256, %s731, %s711, 128, 128, 8
        $region56: #{simple_autoencoder_forward.1} parent=47 // pred_fallthru
          _
        // Predicated region
        $region57: #{simple_autoencoder_forward.1} parent=47 // pred_check
          %p739 = pneg %p240
        $region58: #{simple_autoencoder_forward.1} parent=47 // pred_check_branch
          %741 = sbr.rel (%p739) target = $region60
        $region59: #{simple_autoencoder_forward.1} parent=47 // pred_region
          _
        $region60: #{simple_autoencoder_forward.1} parent=47 // pred_fallthru
          _
      $region48: #{simple_autoencoder_forward.1} parent=5 // pred_fallthru
        _
      %p742 = scmp.le.s32.totalorder 2, %s21
      // Predicated region
      $region61: #{simple_autoencoder_forward.1} parent=5 // pred_check
        %p743 = pneg %p742
      $region62: #{simple_autoencoder_forward.1} parent=5 // pred_check_branch
        %745 = sbr.rel (%p743) target = $region64
      $region63: #{simple_autoencoder_forward.1} parent=5 // pred_region
        %s746 = ssub.s32 %s21, 2
        // Predicated region
        $region65: #{simple_autoencoder_forward.1} parent=63 // pred_check
          %p747 = pneg %p218
        $region66: #{simple_autoencoder_forward.1} parent=63 // pred_check_branch
          %749 = sbr.rel (%p747) target = $region68
        $region67: #{simple_autoencoder_forward.1} parent=63 // pred_region
          %s750 = sand.u32 %s203, 1
          %s751 = scalar_lea.sflag [#allocation4], %s750
          %s752 = sand.u32 %s203, 1
          %s753 = smul.addr %s752, 16
          %s754 = scalar_lea.vmem [#allocation5], %s753
          %755 = dma.done %s751, 256
        $region68: #{simple_autoencoder_forward.1} parent=63 // pred_fallthru
          _
        // Predicated region
        $region69: #{simple_autoencoder_forward.1} parent=63 // pred_check
          %p756 = pneg %p246
        $region70: #{simple_autoencoder_forward.1} parent=63 // pred_check_branch
          %758 = sbr.rel (%p756) target = $region72
        $region71: #{simple_autoencoder_forward.1} parent=63 // pred_region
          %p759 = scmp.lt.s32.totalorder %s32, 1
          %s760 = scalar_select %p759, %s32, 1
          %p761 = scmp.lt.s32.totalorder %s33, 0
          %s762 = scalar_select %p761, %s33, 0
          %s763 = sadd.s32 %s762, %s760
          %s764 = scalar_lea.vmem %s8, %s763
        $region72: #{simple_autoencoder_forward.1} parent=63 // pred_fallthru
          _
      $region64: #{simple_autoencoder_forward.1} parent=5 // pred_fallthru
        _
    $region6: #{simple_autoencoder_forward.1} parent=1 // loop_footer
      %s25 = sadd.s32 1, %s21
    $region7: #{simple_autoencoder_forward.1} parent=1 // loop_footer_branch
      %20 = sbr.rel target = $region3
    $region8: #{simple_autoencoder_forward.1} parent=1 // loop_exit
      _
    %765 = vsyncpa [#allocation3], 1
    %s766 = scalar_lea.sflag [#allocation3], 1
    %767 = vsyncpa %s766, 1
    %768 = vsyncpa [#allocation4], 1
    %s769 = scalar_lea.sflag [#allocation4], 1
    %770 = vsyncpa %s769, 1

</llo_original>
